<compile_context>
chip_gen: v7x
topology: tpu7x:2x2x1
jax: 0.10.0
libtpu: 0.0.40
codegen_flags: <defaults>
</compile_context>

<pallas_src>
import jax
import jax.numpy as jnp
from jax import lax
from jax.experimental import pallas as pl
from jax.experimental.pallas import tpu as pltpu


def _tpu_vmem_and_cores():
    """Best-effort hardware query; safe fallbacks if unavailable."""
    vmem_cap = 64 * 1024 * 1024      # conservative default (v7x per-core VMEM)
    cores = 1
    try:
        info = pltpu.get_tpu_info()
        cap = getattr(info, "vmem_capacity_bytes", None)
        if cap:
            vmem_cap = int(cap)
        for name in ("num_cores", "core_count", "num_tensorcores",
                     "tensorcores_per_chip"):
            n = getattr(info, name, None)
            if n:
                cores = int(n)
                break
    except Exception:
        pass
    return vmem_cap, cores


def _make_jsd_kernel(b, c, tk, ck_pad, need_mask, group):
    """Build the kernel with static shape/tiling parameters closed over."""
    bf = float(b)

    def kernel(a_ref, lt_ref, out_ref, acc_ref, plogp_ref):
        # a_ref    : (B, C)   a[i, j]   = output[i, j]              (resident)
        # lt_ref   : (TK, C)  lt[kk, j] = labels[j, k0 + kk]        (k-block)
        # out_ref  : (1,1,1)  running partial sum for parallel slice p
        # acc_ref  : (TK, C)  VMEM scratch, per-block accumulator
        # plogp_ref: (1, C)   VMEM scratch, cached sum_i pk_n*log(pk_n)
        kb = pl.program_id(1)

        a = a_ref[...]                                    # (B, C)
        lt = lt_ref[...]                                  # (TK, C)

        # ---- i-invariant, block-level quantities ------------------------
        s_a = jnp.sum(a, axis=0, keepdims=True)           # (1, C)   S_A[j]
        inv_s_a = 1.0 / s_a                               # (1, C)
        s_l = jnp.sum(lt, axis=1, keepdims=True)          # (TK, 1)  S_L[k]
        ql = lt * (1.0 / s_l)                             # (TK, C)
        # *0.5 inside log(m) cancels against *0.5 inside log(sum_i m): dropped.
        log_m0 = jnp.log(s_a + bf * lt)                   # (TK, C)  log(2*sum_i m)

        # ---- once per parallel slice: init partial + cache output-only
        #      stats (the only place the (B,C) pk_n is materialized) --------
        @pl.when(kb == 0)
        def _init():
            out_ref[...] = jnp.zeros_like(out_ref)
            pk_n = a * inv_s_a                            # (B, C)
            plogp_ref[...] = jnp.sum(pk_n * jnp.log(pk_n), axis=0, keepdims=True)

        spk = s_a * inv_s_a                               # (1, C) == sum_i pk_n (~1)
        # i-invariant per-(k, j) static contribution; grouped so the large log
        # magnitudes cancel per element (keeps fp32 error tiny):
        static_blk = (plogp_ref[...] + spk * log_m0) \
            + bf * (ql * (jnp.log(ql) + log_m0))          # (TK, C)

        # ---- EUP-bound i-loop, grouped: per group one acc RMW + one ql load,
        #      per i only one small a_row load + one log + one FMA ----------
        def group_update(i0, count, init_val=None):
            t1 = None
            t2 = None
            for u in range(count):
                a_row = a_ref[pl.ds(i0 + u, 1), :]        # (1, C)  output[i, :]
                pk_row = a_row * inv_s_a                  # (1, C)
                lg = jnp.log(a_row + lt)                  # (TK, C) dominant cost (EUP)
                t1 = pk_row * lg if t1 is None else t1 + pk_row * lg
                t2 = lg if t2 is None else t2 + lg
            upd = t1 + ql * t2                            # merged KL(p||m)+KL(q||m)
            if init_val is not None:
                acc_ref[...] = init_val - upd             # group 0 folds static term
            else:
                acc_ref[...] -= upd

        ngroups = b // group
        tail = b - ngroups * group

        group_update(0, group, init_val=static_blk)       # peel group 0
        if ngroups > 1:
            if ngroups <= 4:
                for g in range(1, ngroups):               # static unroll of groups
                    group_update(g * group, group)
            else:
                def body(g, carry):
                    i0 = pl.multiple_of(g * group, group)
                    group_update(i0, group)
                    return carry
                lax.fori_loop(1, ngroups, body, 0)
        if tail:
            group_update(ngroups * group, tail)

        # ---- fold this k-block into the running partial; mask k-padding ----
        blk = acc_ref[...]
        if need_mask:
            p = pl.program_id(0)
            k0 = p * ck_pad + kb * tk
            row = lax.broadcasted_iota(jnp.int32, (tk, 1), 0)
            blk = jnp.where(row + k0 < c, blk, 0.0)
        out_ref[...] += 0.5 * jnp.sum(blk)                # jsd = (kl_pm + kl_qm)/2

    return kernel


def jsd_loss(output, labels):
    """Pallas TPU equivalent of JSD_Loss().forward(output, labels).

    Requires B == C (the PyTorch broadcast `output.unsqueeze(-1) + labels` only
    type-checks for square inputs) and strictly positive entries.
    """
    output = jnp.asarray(output, jnp.float32)
    labels = jnp.asarray(labels, jnp.float32)             # .type(torch.float32)
    b, c = output.shape
    if labels.shape != (b, c):
        raise ValueError("output and labels must have the same shape")
    if b != c:
        raise ValueError(
            "the PyTorch broadcast (output.unsqueeze(-1) + labels) requires B == C")

    # ---- generation-aware VMEM budgeting --------------------------------
    vmem_cap, cores = _tpu_vmem_and_cores()
    vmem_limit = min((vmem_cap * 3) // 4, 96 * 1024 * 1024)   # 96M on 128M chips, 48M on v7x
    vmem_limit = max(int(vmem_limit), 16 * 1024 * 1024)

    itemsize = 4
    resident = 3 * b * c * itemsize        # 2x-buffered resident `output` + (B,C) init temp
    # per k-row of the tile: ~8 live (.,C) f32 slabs (2x labels slab, acc scratch,
    # ql, log_m0, lg/static compiler temps + margin)
    per_k_row = 8 * c * itemsize
    usable = int(vmem_limit * 0.70) - resident
    tk_max = (usable // per_k_row) // 8 * 8 if usable > 0 else 0
    tk_max = max(tk_max, 8)
    # TODO(synk): for very large C (resident (B,C) no longer fits VMEM) add a
    # j/lane tiling axis with S_L = labels.sum(axis=0) precomputed host-side.

    # ---- k-range split / padding -----------------------------------------
    # TODO(synk): use pltpu.CORE_PARALLEL on the leading axis once v7x core-count
    # detection is reliable; plain "parallel" may leave one v7x TensorCore idle.
    num_par = 2 if (cores >= 2 and c >= 16) else 1
    ck_raw = -(-c // num_par)                              # ceil(c / num_par)
    tk = min(tk_max, ((ck_raw + 7) // 8) * 8)              # k tile, multiple of 8
    nkb = -(-ck_raw // tk)                                 # k-blocks per slice
    ck_pad = nkb * tk
    k_total = num_par * ck_pad
    need_mask = (k_total != c)

    # TODO(synk): `.cpu()` in the PyTorch forward is a host transfer no-op here.
    # Glue: present labels as lt[k, j] = labels[j, k] so lane axis = j and
    # sublane axis = k inside the kernel (all broadcasts become row/col ones).
    # TODO(synk): labels.T is an extra C^2 HBM round trip; an in-kernel XLU
    # transpose of each (C, TK) slab would hide it under the EUP-bound loop.
    lt = labels.T
    if k_total > c:
        # pad the k axis with a harmless positive value; contributions of pad
        # rows are masked out inside the kernel.
        lt = jnp.pad(lt, ((0, k_total - c), (0, 0)), constant_values=1.0)

    group = min(8, b)                                      # register-group size (cap 8)
    kernel = _make_jsd_kernel(b=b, c=c, tk=tk, ck_pad=ck_pad,
                              need_mask=need_mask, group=group)

    partials = pl.pallas_call(
        kernel,
        out_shape=jax.ShapeDtypeStruct((num_par, 1, 1), jnp.float32),
        grid_spec=pltpu.PrefetchScalarGridSpec(
            num_scalar_prefetch=0,
            grid=(num_par, nkb),
            in_specs=[
                # output: full array, resident across the whole grid
                # TODO(synk): pipeline_mode=pl.Buffered(1) would halve its VMEM
                # (block index never changes); kept default for compile safety.
                pl.BlockSpec((b, c), lambda p, k: (0, 0)),
                # labels^T: one (TK, C) k-block per grid step (auto double-buffered)
                pl.BlockSpec((tk, c), lambda p, k: (p * nkb + k, 0)),
            ],
            out_specs=pl.BlockSpec((1, 1, 1), lambda p, k: (p, 0, 0)),
            scratch_shapes=[
                pltpu.VMEM((tk, c), jnp.float32),          # per-block accumulator
                pltpu.VMEM((1, c), jnp.float32),           # cached sum_i pk_n*log(pk_n)
            ],
        ),
        compiler_params=pltpu.CompilerParams(
            dimension_semantics=("parallel", "arbitrary"),
            vmem_limit_bytes=int(vmem_limit),
        ),
    )(output, lt)
    return jnp.sum(partials)


def jsd_loss_ref(output, labels):
    """Direct jnp transcription of the PyTorch module (for verification)."""
    def entropy_multi(p, q):
        return jnp.sum(p * jnp.log(p / q), axis=0)

    def kld(pk, qk):
        pk = pk / jnp.sum(pk, axis=0)
        qk = qk / jnp.sum(qk, axis=0)
        return jnp.sum(entropy_multi(pk, qk), axis=0)

    pk = output[..., None]                                 # unsqueeze(-1)
    qk = labels.astype(jnp.float32)
    m = (pk + qk) / 2
    kl_pm = kld(pk, m)
    kl_qm = kld(qk, m)
    return jnp.sum((kl_pm + kl_qm) / 2)


if __name__ == "__main__":
    key = jax.random.PRNGKey(0)
    keys = jax.random.split(key, 6)

    def run_case(n, k1, k2):
        # strictly positive "distribution-like" inputs (log requires positivity)
        out = jax.random.uniform(k1, (n, n), jnp.float32, minval=0.1, maxval=1.0)
        lab = jax.random.uniform(k2, (n, n), jnp.float32, minval=0.1, maxval=1.0)
        res = jsd_loss(out, lab)
        jax.block_until_ready(res)
        ref = jsd_loss_ref(out, lab)
        assert jnp.allclose(res, ref, rtol=2e-4, atol=2e-4), (n, float(res), float(ref))

    run_case(16, keys[0], keys[1])   # aligned C, 2 register groups (static unroll)
    run_case(12, keys[2], keys[3])   # ragged C -> padded + masked k-block, tail group
    run_case(40, keys[4], keys[5])   # >4 groups -> fori_loop group path
    print("KERNEL_OK")
</pallas_src>

<mosaic_0001>
module attributes {stable_mosaic.version = 11 : i64} {
  func.func @kernel(%arg0: i32, %arg1: i32, %arg2: memref<16x16xf32, #tpu.memory_space<vmem>>, %arg3: memref<16x16xf32, #tpu.memory_space<vmem>>, %arg4: memref<1x1x1xf32, #tpu.memory_space<vmem>>, %arg5: memref<16x16xf32, #tpu.memory_space<vmem>>, %arg6: memref<1x16xf32, #tpu.memory_space<vmem>>) attributes {dimension_semantics = [#tpu.dimension_semantics<parallel>, #tpu.dimension_semantics<arbitrary>], iteration_bounds = array<i64: 1, 1>, scalar_prefetch = 0 : i64, scratch_operands = 2 : i64, tpu.core_type = #tpu.core_type<tc>, window_params = [{pipeline_mode = #tpu.pipeline_mode<synchronous>, transform_indices = @transform_0, window_bounds = array<i64: 16, 16>}, {transform_indices = @transform_1, window_bounds = array<i64: 16, 16>}, {transform_indices = @transform_2, window_bounds = array<i64: 1, 1, 1>}]} {
    %c0 = arith.constant 0 : index
    %c0_0 = arith.constant 0 : index
    %0 = vector.load %arg2[%c0, %c0_0] : memref<16x16xf32, #tpu.memory_space<vmem>>, vector<16x16xf32>
    %c0_1 = arith.constant 0 : index
    %c0_2 = arith.constant 0 : index
    %1 = vector.load %arg3[%c0_1, %c0_2] : memref<16x16xf32, #tpu.memory_space<vmem>>, vector<16x16xf32>
    %cst = arith.constant dense<0.000000e+00> : vector<16xf32>
    %2 = vector.multi_reduction <add>, %0, %cst [0] : vector<16x16xf32> to vector<16xf32>
    %3 = vector.shape_cast %2 : vector<16xf32> to vector<1x16xf32>
    %cst_3 = arith.constant 1.000000e+00 : f32
    %4 = vector.broadcast %cst_3 : f32 to vector<1x16xf32>
    %5 = arith.divf %4, %3 : vector<1x16xf32>
    %cst_4 = arith.constant dense<0.000000e+00> : vector<16xf32>
    %6 = vector.multi_reduction <add>, %1, %cst_4 [1] : vector<16x16xf32> to vector<16xf32>
    %7 = vector.shape_cast %6 : vector<16xf32> to vector<16x1xf32>
    %cst_5 = arith.constant 1.000000e+00 : f32
    %8 = vector.broadcast %cst_5 : f32 to vector<16x1xf32>
    %9 = arith.divf %8, %7 : vector<16x1xf32>
    %10 = vector.broadcast %9 : vector<16x1xf32> to vector<16x16xf32>
    %11 = arith.mulf %1, %10 : vector<16x16xf32>
    %cst_6 = arith.constant 1.600000e+01 : f32
    %12 = vector.broadcast %cst_6 : f32 to vector<16x16xf32>
    %13 = arith.mulf %12, %1 : vector<16x16xf32>
    %14 = vector.broadcast %3 : vector<1x16xf32> to vector<16x16xf32>
    %15 = arith.addf %14, %13 : vector<16x16xf32>
    %16 = math.log %15 : vector<16x16xf32>
    %c0_i32 = arith.constant 0 : i32
    %17 = arith.cmpi eq, %arg1, %c0_i32 : i32
    %18 = arith.extui %17 : i1 to i32
    %c0_i32_7 = arith.constant 0 : i32
    %19 = arith.cmpi ne, %18, %c0_i32_7 : i32
    scf.if %19 {
      %cst_44 = arith.constant 0.000000e+00 : f32
      %191 = vector.broadcast %cst_44 : f32 to vector<1x1x1xf32>
      %c0_45 = arith.constant 0 : index
      %c0_46 = arith.constant 0 : index
      %c0_47 = arith.constant 0 : index
      %192 = vector.load %arg4[%c0_45, %c0_46, %c0_47] : memref<1x1x1xf32, #tpu.memory_space<vmem>>, vector<1x1x1xf32>
      tpu.vector_store %arg4[%c0_45, %c0_46, %c0_47], %191 {strides = array<i32>} : memref<1x1x1xf32, #tpu.memory_space<vmem>>, vector<1x1x1xf32>,
      %193 = vector.broadcast %5 : vector<1x16xf32> to vector<16x16xf32>
      %194 = arith.mulf %0, %193 : vector<16x16xf32>
      %195 = math.log %194 : vector<16x16xf32>
      %196 = arith.mulf %194, %195 : vector<16x16xf32>
      %cst_48 = arith.constant dense<0.000000e+00> : vector<16xf32>
      %197 = vector.multi_reduction <add>, %196, %cst_48 [0] : vector<16x16xf32> to vector<16xf32>
      %198 = vector.shape_cast %197 : vector<16xf32> to vector<1x16xf32>
      %c0_49 = arith.constant 0 : index
      %c0_50 = arith.constant 0 : index
      %199 = vector.load %arg6[%c0_49, %c0_50] : memref<1x16xf32, #tpu.memory_space<vmem>>, vector<1x16xf32>
      tpu.vector_store %arg6[%c0_49, %c0_50], %198 {strides = array<i32>} : memref<1x16xf32, #tpu.memory_space<vmem>>, vector<1x16xf32>,
    } else {
    }
    %20 = arith.mulf %3, %5 : vector<1x16xf32>
    %c0_8 = arith.constant 0 : index
    %c0_9 = arith.constant 0 : index
    %21 = vector.load %arg6[%c0_8, %c0_9] : memref<1x16xf32, #tpu.memory_space<vmem>>, vector<1x16xf32>
    %22 = vector.broadcast %20 : vector<1x16xf32> to vector<16x16xf32>
    %23 = arith.mulf %22, %16 : vector<16x16xf32>
    %24 = vector.broadcast %21 : vector<1x16xf32> to vector<16x16xf32>
    %25 = arith.addf %24, %23 : vector<16x16xf32>
    %26 = math.log %11 : vector<16x16xf32>
    %27 = arith.addf %26, %16 : vector<16x16xf32>
    %28 = arith.mulf %11, %27 : vector<16x16xf32>
    %cst_10 = arith.constant 1.600000e+01 : f32
    %29 = vector.broadcast %cst_10 : f32 to vector<16x16xf32>
    %30 = arith.mulf %29, %28 : vector<16x16xf32>
    %31 = arith.addf %25, %30 : vector<16x16xf32>
    %c0_11 = arith.constant 0 : index
    %c0_12 = arith.constant 0 : index
    %32 = vector.load %arg2[%c0_11, %c0_12] : memref<16x16xf32, #tpu.memory_space<vmem>>, vector<1x16xf32>
    %33 = arith.mulf %32, %5 : vector<1x16xf32>
    %34 = vector.broadcast %32 : vector<1x16xf32> to vector<16x16xf32>
    %35 = arith.addf %34, %1 : vector<16x16xf32>
    %36 = math.log %35 : vector<16x16xf32>
    %37 = vector.broadcast %33 : vector<1x16xf32> to vector<16x16xf32>
    %38 = arith.mulf %37, %36 : vector<16x16xf32>
    %c1 = arith.constant 1 : index
    %c0_13 = arith.constant 0 : index
    %39 = vector.load %arg2[%c1, %c0_13] : memref<16x16xf32, #tpu.memory_space<vmem>>, vector<1x16xf32>
    %40 = arith.mulf %39, %5 : vector<1x16xf32>
    %41 = vector.broadcast %39 : vector<1x16xf32> to vector<16x16xf32>
    %42 = arith.addf %41, %1 : vector<16x16xf32>
    %43 = math.log %42 : vector<16x16xf32>
    %44 = vector.broadcast %40 : vector<1x16xf32> to vector<16x16xf32>
    %45 = arith.mulf %44, %43 : vector<16x16xf32>
    %46 = arith.addf %38, %45 : vector<16x16xf32>
    %47 = arith.addf %36, %43 : vector<16x16xf32>
    %c2 = arith.constant 2 : index
    %c0_14 = arith.constant 0 : index
    %48 = vector.load %arg2[%c2, %c0_14] : memref<16x16xf32, #tpu.memory_space<vmem>>, vector<1x16xf32>
    %49 = arith.mulf %48, %5 : vector<1x16xf32>
    %50 = vector.broadcast %48 : vector<1x16xf32> to vector<16x16xf32>
    %51 = arith.addf %50, %1 : vector<16x16xf32>
    %52 = math.log %51 : vector<16x16xf32>
    %53 = vector.broadcast %49 : vector<1x16xf32> to vector<16x16xf32>
    %54 = arith.mulf %53, %52 : vector<16x16xf32>
    %55 = arith.addf %46, %54 : vector<16x16xf32>
    %56 = arith.addf %47, %52 : vector<16x16xf32>
    %c3 = arith.constant 3 : index
    %c0_15 = arith.constant 0 : index
    %57 = vector.load %arg2[%c3, %c0_15] : memref<16x16xf32, #tpu.memory_space<vmem>>, vector<1x16xf32>
    %58 = arith.mulf %57, %5 : vector<1x16xf32>
    %59 = vector.broadcast %57 : vector<1x16xf32> to vector<16x16xf32>
    %60 = arith.addf %59, %1 : vector<16x16xf32>
    %61 = math.log %60 : vector<16x16xf32>
    %62 = vector.broadcast %58 : vector<1x16xf32> to vector<16x16xf32>
    %63 = arith.mulf %62, %61 : vector<16x16xf32>
    %64 = arith.addf %55, %63 : vector<16x16xf32>
    %65 = arith.addf %56, %61 : vector<16x16xf32>
    %c4 = arith.constant 4 : index
    %c0_16 = arith.constant 0 : index
    %66 = vector.load %arg2[%c4, %c0_16] : memref<16x16xf32, #tpu.memory_space<vmem>>, vector<1x16xf32>
    %67 = arith.mulf %66, %5 : vector<1x16xf32>
    %68 = vector.broadcast %66 : vector<1x16xf32> to vector<16x16xf32>
    %69 = arith.addf %68, %1 : vector<16x16xf32>
    %70 = math.log %69 : vector<16x16xf32>
    %71 = vector.broadcast %67 : vector<1x16xf32> to vector<16x16xf32>
    %72 = arith.mulf %71, %70 : vector<16x16xf32>
    %73 = arith.addf %64, %72 : vector<16x16xf32>
    %74 = arith.addf %65, %70 : vector<16x16xf32>
    %c5 = arith.constant 5 : index
    %c0_17 = arith.constant 0 : index
    %75 = vector.load %arg2[%c5, %c0_17] : memref<16x16xf32, #tpu.memory_space<vmem>>, vector<1x16xf32>
    %76 = arith.mulf %75, %5 : vector<1x16xf32>
    %77 = vector.broadcast %75 : vector<1x16xf32> to vector<16x16xf32>
    %78 = arith.addf %77, %1 : vector<16x16xf32>
    %79 = math.log %78 : vector<16x16xf32>
    %80 = vector.broadcast %76 : vector<1x16xf32> to vector<16x16xf32>
    %81 = arith.mulf %80, %79 : vector<16x16xf32>
    %82 = arith.addf %73, %81 : vector<16x16xf32>
    %83 = arith.addf %74, %79 : vector<16x16xf32>
    %c6 = arith.constant 6 : index
    %c0_18 = arith.constant 0 : index
    %84 = vector.load %arg2[%c6, %c0_18] : memref<16x16xf32, #tpu.memory_space<vmem>>, vector<1x16xf32>
    %85 = arith.mulf %84, %5 : vector<1x16xf32>
    %86 = vector.broadcast %84 : vector<1x16xf32> to vector<16x16xf32>
    %87 = arith.addf %86, %1 : vector<16x16xf32>
    %88 = math.log %87 : vector<16x16xf32>
    %89 = vector.broadcast %85 : vector<1x16xf32> to vector<16x16xf32>
    %90 = arith.mulf %89, %88 : vector<16x16xf32>
    %91 = arith.addf %82, %90 : vector<16x16xf32>
    %92 = arith.addf %83, %88 : vector<16x16xf32>
    %c7 = arith.constant 7 : index
    %c0_19 = arith.constant 0 : index
    %93 = vector.load %arg2[%c7, %c0_19] : memref<16x16xf32, #tpu.memory_space<vmem>>, vector<1x16xf32>
    %94 = arith.mulf %93, %5 : vector<1x16xf32>
    %95 = vector.broadcast %93 : vector<1x16xf32> to vector<16x16xf32>
    %96 = arith.addf %95, %1 : vector<16x16xf32>
    %97 = math.log %96 : vector<16x16xf32>
    %98 = vector.broadcast %94 : vector<1x16xf32> to vector<16x16xf32>
    %99 = arith.mulf %98, %97 : vector<16x16xf32>
    %100 = arith.addf %91, %99 : vector<16x16xf32>
    %101 = arith.addf %92, %97 : vector<16x16xf32>
    %102 = arith.mulf %11, %101 : vector<16x16xf32>
    %103 = arith.addf %100, %102 : vector<16x16xf32>
    %104 = arith.subf %31, %103 : vector<16x16xf32>
    %c0_20 = arith.constant 0 : index
    %c0_21 = arith.constant 0 : index
    %105 = vector.load %arg5[%c0_20, %c0_21] : memref<16x16xf32, #tpu.memory_space<vmem>>, vector<16x16xf32>
    tpu.vector_store %arg5[%c0_20, %c0_21], %104 {strides = array<i32>} : memref<16x16xf32, #tpu.memory_space<vmem>>, vector<16x16xf32>,
    %c8 = arith.constant 8 : index
    %c0_22 = arith.constant 0 : index
    %106 = vector.load %arg2[%c8, %c0_22] : memref<16x16xf32, #tpu.memory_space<vmem>>, vector<1x16xf32>
    %107 = arith.mulf %106, %5 : vector<1x16xf32>
    %108 = vector.broadcast %106 : vector<1x16xf32> to vector<16x16xf32>
    %109 = arith.addf %108, %1 : vector<16x16xf32>
    %110 = math.log %109 : vector<16x16xf32>
    %111 = vector.broadcast %107 : vector<1x16xf32> to vector<16x16xf32>
    %112 = arith.mulf %111, %110 : vector<16x16xf32>
    %c9 = arith.constant 9 : index
    %c0_23 = arith.constant 0 : index
    %113 = vector.load %arg2[%c9, %c0_23] : memref<16x16xf32, #tpu.memory_space<vmem>>, vector<1x16xf32>
    %114 = arith.mulf %113, %5 : vector<1x16xf32>
    %115 = vector.broadcast %113 : vector<1x16xf32> to vector<16x16xf32>
    %116 = arith.addf %115, %1 : vector<16x16xf32>
    %117 = math.log %116 : vector<16x16xf32>
    %118 = vector.broadcast %114 : vector<1x16xf32> to vector<16x16xf32>
    %119 = arith.mulf %118, %117 : vector<16x16xf32>
    %120 = arith.addf %112, %119 : vector<16x16xf32>
    %121 = arith.addf %110, %117 : vector<16x16xf32>
    %c10 = arith.constant 10 : index
    %c0_24 = arith.constant 0 : index
    %122 = vector.load %arg2[%c10, %c0_24] : memref<16x16xf32, #tpu.memory_space<vmem>>, vector<1x16xf32>
    %123 = arith.mulf %122, %5 : vector<1x16xf32>
    %124 = vector.broadcast %122 : vector<1x16xf32> to vector<16x16xf32>
    %125 = arith.addf %124, %1 : vector<16x16xf32>
    %126 = math.log %125 : vector<16x16xf32>
    %127 = vector.broadcast %123 : vector<1x16xf32> to vector<16x16xf32>
    %128 = arith.mulf %127, %126 : vector<16x16xf32>
    %129 = arith.addf %120, %128 : vector<16x16xf32>
    %130 = arith.addf %121, %126 : vector<16x16xf32>
    %c11 = arith.constant 11 : index
    %c0_25 = arith.constant 0 : index
    %131 = vector.load %arg2[%c11, %c0_25] : memref<16x16xf32, #tpu.memory_space<vmem>>, vector<1x16xf32>
    %132 = arith.mulf %131, %5 : vector<1x16xf32>
    %133 = vector.broadcast %131 : vector<1x16xf32> to vector<16x16xf32>
    %134 = arith.addf %133, %1 : vector<16x16xf32>
    %135 = math.log %134 : vector<16x16xf32>
    %136 = vector.broadcast %132 : vector<1x16xf32> to vector<16x16xf32>
    %137 = arith.mulf %136, %135 : vector<16x16xf32>
    %138 = arith.addf %129, %137 : vector<16x16xf32>
    %139 = arith.addf %130, %135 : vector<16x16xf32>
    %c12 = arith.constant 12 : index
    %c0_26 = arith.constant 0 : index
    %140 = vector.load %arg2[%c12, %c0_26] : memref<16x16xf32, #tpu.memory_space<vmem>>, vector<1x16xf32>
    %141 = arith.mulf %140, %5 : vector<1x16xf32>
    %142 = vector.broadcast %140 : vector<1x16xf32> to vector<16x16xf32>
    %143 = arith.addf %142, %1 : vector<16x16xf32>
    %144 = math.log %143 : vector<16x16xf32>
    %145 = vector.broadcast %141 : vector<1x16xf32> to vector<16x16xf32>
    %146 = arith.mulf %145, %144 : vector<16x16xf32>
    %147 = arith.addf %138, %146 : vector<16x16xf32>
    %148 = arith.addf %139, %144 : vector<16x16xf32>
    %c13 = arith.constant 13 : index
    %c0_27 = arith.constant 0 : index
    %149 = vector.load %arg2[%c13, %c0_27] : memref<16x16xf32, #tpu.memory_space<vmem>>, vector<1x16xf32>
    %150 = arith.mulf %149, %5 : vector<1x16xf32>
    %151 = vector.broadcast %149 : vector<1x16xf32> to vector<16x16xf32>
    %152 = arith.addf %151, %1 : vector<16x16xf32>
    %153 = math.log %152 : vector<16x16xf32>
    %154 = vector.broadcast %150 : vector<1x16xf32> to vector<16x16xf32>
    %155 = arith.mulf %154, %153 : vector<16x16xf32>
    %156 = arith.addf %147, %155 : vector<16x16xf32>
    %157 = arith.addf %148, %153 : vector<16x16xf32>
    %c14 = arith.constant 14 : index
    %c0_28 = arith.constant 0 : index
    %158 = vector.load %arg2[%c14, %c0_28] : memref<16x16xf32, #tpu.memory_space<vmem>>, vector<1x16xf32>
    %159 = arith.mulf %158, %5 : vector<1x16xf32>
    %160 = vector.broadcast %158 : vector<1x16xf32> to vector<16x16xf32>
    %161 = arith.addf %160, %1 : vector<16x16xf32>
    %162 = math.log %161 : vector<16x16xf32>
    %163 = vector.broadcast %159 : vector<1x16xf32> to vector<16x16xf32>
    %164 = arith.mulf %163, %162 : vector<16x16xf32>
    %165 = arith.addf %156, %164 : vector<16x16xf32>
    %166 = arith.addf %157, %162 : vector<16x16xf32>
    %c15 = arith.constant 15 : index
    %c0_29 = arith.constant 0 : index
    %167 = vector.load %arg2[%c15, %c0_29] : memref<16x16xf32, #tpu.memory_space<vmem>>, vector<1x16xf32>
    %168 = arith.mulf %167, %5 : vector<1x16xf32>
    %169 = vector.broadcast %167 : vector<1x16xf32> to vector<16x16xf32>
    %170 = arith.addf %169, %1 : vector<16x16xf32>
    %171 = math.log %170 : vector<16x16xf32>
    %172 = vector.broadcast %168 : vector<1x16xf32> to vector<16x16xf32>
    %173 = arith.mulf %172, %171 : vector<16x16xf32>
    %174 = arith.addf %165, %173 : vector<16x16xf32>
    %175 = arith.addf %166, %171 : vector<16x16xf32>
    %176 = arith.mulf %11, %175 : vector<16x16xf32>
    %177 = arith.addf %174, %176 : vector<16x16xf32>
    %c0_30 = arith.constant 0 : index
    %c0_31 = arith.constant 0 : index
    %178 = vector.load %arg5[%c0_30, %c0_31] : memref<16x16xf32, #tpu.memory_space<vmem>>, vector<16x16xf32>
    %179 = arith.subf %178, %177 : vector<16x16xf32>
    %c0_32 = arith.constant 0 : index
    %c0_33 = arith.constant 0 : index
    %180 = vector.load %arg5[%c0_32, %c0_33] : memref<16x16xf32, #tpu.memory_space<vmem>>, vector<16x16xf32>
    tpu.vector_store %arg5[%c0_32, %c0_33], %179 {strides = array<i32>} : memref<16x16xf32, #tpu.memory_space<vmem>>, vector<16x16xf32>,
    %c0_34 = arith.constant 0 : index
    %c0_35 = arith.constant 0 : index
    %181 = vector.load %arg5[%c0_34, %c0_35] : memref<16x16xf32, #tpu.memory_space<vmem>>, vector<16x16xf32>
    %c0_36 = arith.constant 0 : index
    %c0_37 = arith.constant 0 : index
    %c0_38 = arith.constant 0 : index
    %182 = vector.load %arg4[%c0_36, %c0_37, %c0_38] : memref<1x1x1xf32, #tpu.memory_space<vmem>>, vector<1x1x1xf32>
    %183 = vector.shape_cast %181 : vector<16x16xf32> to vector<1x16x16xf32>
    %cst_39 = arith.constant dense<0.000000e+00> : vector<1xf32>
    %184 = vector.multi_reduction <add>, %183, %cst_39 [1, 2] : vector<1x16x16xf32> to vector<1xf32>
    %185 = vector.shape_cast %184 : vector<1xf32> to vector<1x1x1xf32>
    %186 = vector.extract %185[0, 0, 0] : f32 from vector<1x1x1xf32>
    %cst_40 = arith.constant 5.000000e-01 : f32
    %187 = arith.mulf %cst_40, %186 : f32
    %188 = vector.broadcast %187 : f32 to vector<1x1x1xf32>
    %189 = arith.addf %182, %188 : vector<1x1x1xf32>
    %c0_41 = arith.constant 0 : index
    %c0_42 = arith.constant 0 : index
    %c0_43 = arith.constant 0 : index
    %190 = vector.load %arg4[%c0_41, %c0_42, %c0_43] : memref<1x1x1xf32, #tpu.memory_space<vmem>>, vector<1x1x1xf32>
    tpu.vector_store %arg4[%c0_41, %c0_42, %c0_43], %189 {strides = array<i32>} : memref<1x1x1xf32, #tpu.memory_space<vmem>>, vector<1x1x1xf32>,
    return
  }
  func.func @transform_0(%arg0: i32, %arg1: i32) -> (i32, i32) {
    %c0_i32 = arith.constant 0 : i32
    %c0_i32_0 = arith.constant 0 : i32
    %c0_i32_1 = arith.constant 0 : i32
    return %c0_i32, %c0_i32_0 : i32, i32
  }
  func.func @transform_1(%arg0: i32, %arg1: i32) -> (i32, i32) {
    %c1_i32 = arith.constant 1 : i32
    %0 = arith.muli %arg0, %c1_i32 : i32
    %1 = arith.addi %0, %arg1 : i32
    %c0_i32 = arith.constant 0 : i32
    %c0_i32_0 = arith.constant 0 : i32
    return %1, %c0_i32 : i32, i32
  }
  func.func @transform_2(%arg0: i32, %arg1: i32) -> (i32, i32, i32) {
    %c0_i32 = arith.constant 0 : i32
    %c0_i32_0 = arith.constant 0 : i32
    %c0_i32_1 = arith.constant 0 : i32
    return %arg0, %c0_i32, %c0_i32_0 : i32, i32, i32
  }
}

</mosaic_0001>

<llo_original>
// kernel: tpu_custom_call.1
$region0: #{tpu_custom_call.1}
  #allocation0 [shape = 'u32[]', space=smem, size = 0x4, offset = 0x4, fixed_abs, tag = 'smem constant byte address 0x4 - core index']
  #allocation1 [shape = 'u32[144,128]{1,0:T(1,128)}', space=vmem, size = 0x12000, scoped, tag = 'internal scratch']
  #allocation2 [shape = 'f32[16,16]{1,0:T(8,128)}', space=vmem, size = 0x2000, scoped, tag = 'scratch operand']
  #allocation3 [shape = 'f32[1,16]{1,0:T(1,128)}', space=vmem, size = 0x200, scoped, tag = 'scratch operand']
  %s0 = inlined_call_operand.hbm [shape: f32[16,16], index: 0, kind: input, shape index: {}]
  %s1 = inlined_call_operand.hbm [shape: f32[16,16], index: 1, kind: input, shape index: {}]
  %s2 = inlined_call_operand.hbm [shape: f32[1,1,1], index: 2, kind: output, shape index: {}]
  %s3 = sld [smem:[#allocation0]]
  $region30: #{tpu_custom_call.1} parent=0
    _
  %s5 = ssub.s32 1, %s3
  %s6 = scalar_select 0, %s5, %s3
  $region1: #{tpu_custom_call.1} parent=0
    #allocation4 [shape = 'u8[8192]{0}', space=vmem, size = 0x2000, scoped, tag = 'input window, operand 0, single buffered']
    #allocation5 [shape = 's32[1]{0}', space=sflag, size = 0x4, scoped, tag = 'scoped memory for tpu_custom_call.1']
    #allocation6 [shape = 's32[1]{0}', space=sflag, size = 0x4, scoped, tag = 'scoped memory for tpu_custom_call.1']
    #allocation7 [shape = 'u8[8192]{0}', space=vmem, size = 0x2000, scoped, tag = 'input window, operand 1, single buffered']
    #allocation8 [shape = 's32[1]{0}', space=sflag, size = 0x4, scoped, tag = 'scoped memory for tpu_custom_call.1']
    #allocation9 [shape = 'u8[512]{0}', space=vmem, size = 0x400, scoped, tag = 'output window, operand 0, single buffered']
    %7 = vsyncpa [#allocation5], 0
    %8 = vsyncpa [#allocation8], 0
    %9 = vsyncpa [#allocation6], 0
    // Predicated region
    $region2: #{tpu_custom_call.1} parent=1 // pred_check
      _
    $region3: #{tpu_custom_call.1} parent=1 // pred_check_branch
      %11 = sbr.rel (0) target = $region5
    $region4: #{tpu_custom_call.1} parent=1 // pred_region
      %s13 = ssub.s32 256, 256
      %14 = vsyncadd [#allocation5], %s13
      %s15 = sshll.u32 [#allocation4], 4
      %s16 = int_to_ptr.vmem [resolvable:$true] %s15
      %21 = dma.hbm_to_vmem [thread:$0]  %s0, 256, %s16, [#allocation5], 128, 128, 8
    $region5: #{tpu_custom_call.1} parent=1 // pred_fallthru
      _
    // Predicated region
    $region6: #{tpu_custom_call.1} parent=1 // pred_check
      _
    $region7: #{tpu_custom_call.1} parent=1 // pred_check_branch
      %23 = sbr.rel (0) target = $region9
    $region8: #{tpu_custom_call.1} parent=1 // pred_region
      %s24 = sadd.s32 0, 0
      %s25 = smul.u32 2, %s24
      %s27 = ssub.s32 256, 256
      %28 = vsyncadd [#allocation8], %s27
      %s29 = smul.addr %s25, 128
      %s30 = scalar_lea.hbm %s1, %s29
      %s31 = sshll.u32 [#allocation7], 4
      %s32 = int_to_ptr.vmem [resolvable:$true] %s31
      %37 = dma.hbm_to_vmem [thread:$0]  %s30, 256, %s32, [#allocation8], 128, 128, 8
    $region9: #{tpu_custom_call.1} parent=1 // pred_fallthru
      _
    // Predicated region
    $region10: #{tpu_custom_call.1} parent=1 // pred_check
      _
    $region11: #{tpu_custom_call.1} parent=1 // pred_check_branch
      %39 = sbr.rel (0) target = $region13
    $region12: #{tpu_custom_call.1} parent=1 // pred_region
      %40 = dma.done [#allocation5], 256
    $region13: #{tpu_custom_call.1} parent=1 // pred_fallthru
      _
    // Predicated region
    $region14: #{tpu_custom_call.1} parent=1 // pred_check
      _
    $region15: #{tpu_custom_call.1} parent=1 // pred_check_branch
      %42 = sbr.rel (0) target = $region17
    $region16: #{tpu_custom_call.1} parent=1 // pred_region
      %43 = dma.done [#allocation8], 256
    $region17: #{tpu_custom_call.1} parent=1 // pred_fallthru
      _
    %s44 = sadd.s32 0, 0
    %s45 = smul.u32 2, %s44
    %v46 = vld [vmem:[#allocation4] sm:$0xff]
    %v47 = vld [vmem:[#allocation4 + $0x8] sm:$0xff]
    %v48 = vld [vmem:[#allocation7] sm:$0xff]
    %v49 = vld [vmem:[#allocation7 + $0x8] sm:$0xff]
    %vm50 = vcmask 130048
    %v51 = vsel %vm50, %v46, 0.0
    %v52 = vsel %vm50, %v47, 0.0
    %v53 = vadd.f32 %v51, %v52
    %v54 = vrot.slane %v53, 4
    %v55 = vadd.f32 %v53, %v54
    %v56 = vrot.slane %v55, 2
    %v57 = vadd.f32 %v55, %v56
    %v58 = vrot.slane %v57, 1
    %v59 = vadd.f32 %v57, %v58
    %v60 = vrcp.pop %v59
    %v61 = vmul.f32 1.0, %v60
    %v62 = vsel %vm50, %v48, 0.0
    %63 = vadd.xlane.f32.xlu0 %v62
    %v64 = vpop.xlane.xlu0 %63
    %v65 = vsel %vm50, %v49, 0.0
    %66 = vadd.xlane.f32.xlu0 %v65
    %v67 = vpop.xlane.xlu0 %66
    %v68 = vrcp.pop %v64
    %v69 = vmul.f32 1.0, %v68
    %v70 = vrcp.pop %v67
    %v71 = vmul.f32 1.0, %v70
    %v72 = vmul.f32 %v48, %v69
    %v73 = vmul.f32 %v49, %v71
    %v74 = vmul.f32 %v48, 16.0
    %v75 = vmul.f32 %v49, 16.0
    %v76 = vadd.f32 %v59, %v74
    %v77 = vadd.f32 %v59, %v75
    %v78 = vlog2.pop %v76
    %v79 = vmul.f32 %v78, 0.6931472
    %v80 = vlog2.pop %v77
    %v81 = vmul.f32 %v80, 0.6931472
    %p82 = scmp.eq.s32.totalorder 0, 0
    // Predicated region
    $region18: #{tpu_custom_call.1} parent=1 // pred_check
      %p83 = pneg %p82
    $region19: #{tpu_custom_call.1} parent=1 // pred_check_branch
      %85 = sbr.rel (%p83) target = $region21
    $region20: #{tpu_custom_call.1} parent=1 // pred_region
      %vm86 = vcmask 0
      %87 = vst.msk [vmem:[#allocation9] sm:$0x1] %vm86, 0.0
      %v88 = vmul.f32 %v46, %v61
      %v89 = vmul.f32 %v47, %v61
      %v90 = vlog2.pop %v88
      %v91 = vmul.f32 %v90, 0.6931472
      %v92 = vlog2.pop %v89
      %v93 = vmul.f32 %v92, 0.6931472
      %v94 = vmul.f32 %v88, %v91
      %v95 = vmul.f32 %v89, %v93
      %v96 = vsel %vm50, %v94, 0.0
      %v97 = vsel %vm50, %v95, 0.0
      %v98 = vadd.f32 %v96, %v97
      %v99 = vrot.slane %v98, 4
      %v100 = vadd.f32 %v98, %v99
      %v101 = vrot.slane %v100, 2
      %v102 = vadd.f32 %v100, %v101
      %v103 = vrot.slane %v102, 1
      %v104 = vadd.f32 %v102, %v103
      %vm105 = vcmask 122880
      %106 = vst.msk [vmem:[#allocation3] sm:$0x1] %vm105, %v104
    $region21: #{tpu_custom_call.1} parent=1 // pred_fallthru
      _
    %v107 = vmul.f32 %v59, %v61
    %v108 = vld [vmem:[#allocation3] sm:$0x1]
    %v109 = vmul.f32 %v107, %v79
    %v110 = vmul.f32 %v107, %v81
    %v112 = vlaneseq
    %v113 = vshrl.u32 %v112, 7
    %v114 = vsub.s32 0, %v113
    %v115 = vrot.slane %v108, %v114
    %v117 = vadd.f32 %v115, %v109
    %v118 = vadd.f32 %v115, %v110
    %v119 = vlog2.pop %v72
    %v120 = vmul.f32 %v119, 0.6931472
    %v121 = vlog2.pop %v73
    %v122 = vmul.f32 %v121, 0.6931472
    %v123 = vadd.f32 %v120, %v79
    %v124 = vadd.f32 %v122, %v81
    %v125 = vmul.f32 %v72, %v123
    %v126 = vmul.f32 %v73, %v124
    %v127 = vmul.f32 %v125, 16.0
    %v128 = vmul.f32 %v126, 16.0
    %v129 = vadd.f32 %v117, %v127
    %v130 = vadd.f32 %v118, %v128
    %v131 = vld [vmem:[#allocation4] sm:$0x1]
    %v132 = vmul.f32 %v131, %v61
    %v133 = vlaneseq
    %v134 = vshrl.u32 %v133, 7
    %v135 = vsub.s32 0, %v134
    %v136 = vrot.slane %v131, %v135
    %v137 = vadd.f32 %v136, %v48
    %v138 = vadd.f32 %v136, %v49
    %v139 = vlog2.pop %v137
    %v140 = vmul.f32 %v139, 0.6931472
    %v141 = vlog2.pop %v138
    %v142 = vmul.f32 %v141, 0.6931472
    %v143 = vlaneseq
    %v144 = vshrl.u32 %v143, 7
    %v145 = vsub.s32 0, %v144
    %v146 = vrot.slane %v132, %v145
    %v147 = vmul.f32 %v146, %v140
    %v148 = vmul.f32 %v146, %v142
    %v149 = vld [vmem:[#allocation4 + $0x1] sm:$0x1]
    %v150 = vmul.f32 %v149, %v61
    %v151 = vlaneseq
    %v152 = vshrl.u32 %v151, 7
    %v153 = vsub.s32 0, %v152
    %v154 = vrot.slane %v149, %v153
    %v155 = vadd.f32 %v154, %v48
    %v156 = vadd.f32 %v154, %v49
    %v157 = vlog2.pop %v155
    %v158 = vmul.f32 %v157, 0.6931472
    %v159 = vlog2.pop %v156
    %v160 = vmul.f32 %v159, 0.6931472
    %v161 = vlaneseq
    %v162 = vshrl.u32 %v161, 7
    %v163 = vsub.s32 0, %v162
    %v164 = vrot.slane %v150, %v163
    %v165 = vmul.f32 %v164, %v158
    %v166 = vmul.f32 %v164, %v160
    %v167 = vadd.f32 %v147, %v165
    %v168 = vadd.f32 %v148, %v166
    %v169 = vadd.f32 %v140, %v158
    %v170 = vadd.f32 %v142, %v160
    %v171 = vld [vmem:[#allocation4 + $0x2] sm:$0x1]
    %v172 = vmul.f32 %v171, %v61
    %v173 = vlaneseq
    %v174 = vshrl.u32 %v173, 7
    %v175 = vsub.s32 0, %v174
    %v176 = vrot.slane %v171, %v175
    %v177 = vadd.f32 %v176, %v48
    %v178 = vadd.f32 %v176, %v49
    %v179 = vlog2.pop %v177
    %v180 = vmul.f32 %v179, 0.6931472
    %v181 = vlog2.pop %v178
    %v182 = vmul.f32 %v181, 0.6931472
    %v183 = vlaneseq
    %v184 = vshrl.u32 %v183, 7
    %v185 = vsub.s32 0, %v184
    %v186 = vrot.slane %v172, %v185
    %v187 = vmul.f32 %v186, %v180
    %v188 = vmul.f32 %v186, %v182
    %v189 = vadd.f32 %v167, %v187
    %v190 = vadd.f32 %v168, %v188
    %v191 = vadd.f32 %v169, %v180
    %v192 = vadd.f32 %v170, %v182
    %v193 = vld [vmem:[#allocation4 + $0x3] sm:$0x1]
    %v194 = vmul.f32 %v193, %v61
    %v195 = vlaneseq
    %v196 = vshrl.u32 %v195, 7
    %v197 = vsub.s32 0, %v196
    %v198 = vrot.slane %v193, %v197
    %v199 = vadd.f32 %v198, %v48
    %v200 = vadd.f32 %v198, %v49
    %v201 = vlog2.pop %v199
    %v202 = vmul.f32 %v201, 0.6931472
    %v203 = vlog2.pop %v200
    %v204 = vmul.f32 %v203, 0.6931472
    %v205 = vlaneseq
    %v206 = vshrl.u32 %v205, 7
    %v207 = vsub.s32 0, %v206
    %v208 = vrot.slane %v194, %v207
    %v209 = vmul.f32 %v208, %v202
    %v210 = vmul.f32 %v208, %v204
    %v211 = vadd.f32 %v189, %v209
    %v212 = vadd.f32 %v190, %v210
    %v213 = vadd.f32 %v191, %v202
    %v214 = vadd.f32 %v192, %v204
    %v215 = vld [vmem:[#allocation4 + $0x4] sm:$0x1]
    %v216 = vmul.f32 %v215, %v61
    %v217 = vlaneseq
    %v218 = vshrl.u32 %v217, 7
    %v219 = vsub.s32 0, %v218
    %v220 = vrot.slane %v215, %v219
    %v221 = vadd.f32 %v220, %v48
    %v222 = vadd.f32 %v220, %v49
    %v223 = vlog2.pop %v221
    %v224 = vmul.f32 %v223, 0.6931472
    %v225 = vlog2.pop %v222
    %v226 = vmul.f32 %v225, 0.6931472
    %v227 = vlaneseq
    %v228 = vshrl.u32 %v227, 7
    %v229 = vsub.s32 0, %v228
    %v230 = vrot.slane %v216, %v229
    %v231 = vmul.f32 %v230, %v224
    %v232 = vmul.f32 %v230, %v226
    %v233 = vadd.f32 %v211, %v231
    %v234 = vadd.f32 %v212, %v232
    %v235 = vadd.f32 %v213, %v224
    %v236 = vadd.f32 %v214, %v226
    %v237 = vld [vmem:[#allocation4 + $0x5] sm:$0x1]
    %v238 = vmul.f32 %v237, %v61
    %v239 = vlaneseq
    %v240 = vshrl.u32 %v239, 7
    %v241 = vsub.s32 0, %v240
    %v242 = vrot.slane %v237, %v241
    %v243 = vadd.f32 %v242, %v48
    %v244 = vadd.f32 %v242, %v49
    %v245 = vlog2.pop %v243
    %v246 = vmul.f32 %v245, 0.6931472
    %v247 = vlog2.pop %v244
    %v248 = vmul.f32 %v247, 0.6931472
    %v249 = vlaneseq
    %v250 = vshrl.u32 %v249, 7
    %v251 = vsub.s32 0, %v250
    %v252 = vrot.slane %v238, %v251
    %v253 = vmul.f32 %v252, %v246
    %v254 = vmul.f32 %v252, %v248
    %v255 = vadd.f32 %v233, %v253
    %v256 = vadd.f32 %v234, %v254
    %v257 = vadd.f32 %v235, %v246
    %v258 = vadd.f32 %v236, %v248
    %v259 = vld [vmem:[#allocation4 + $0x6] sm:$0x1]
    %v260 = vmul.f32 %v259, %v61
    %v261 = vlaneseq
    %v262 = vshrl.u32 %v261, 7
    %v263 = vsub.s32 0, %v262
    %v264 = vrot.slane %v259, %v263
    %v265 = vadd.f32 %v264, %v48
    %v266 = vadd.f32 %v264, %v49
    %v267 = vlog2.pop %v265
    %v268 = vmul.f32 %v267, 0.6931472
    %v269 = vlog2.pop %v266
    %v270 = vmul.f32 %v269, 0.6931472
    %v271 = vlaneseq
    %v272 = vshrl.u32 %v271, 7
    %v273 = vsub.s32 0, %v272
    %v274 = vrot.slane %v260, %v273
    %v275 = vmul.f32 %v274, %v268
    %v276 = vmul.f32 %v274, %v270
    %v277 = vadd.f32 %v255, %v275
    %v278 = vadd.f32 %v256, %v276
    %v279 = vadd.f32 %v257, %v268
    %v280 = vadd.f32 %v258, %v270
    %v281 = vld [vmem:[#allocation4 + $0x7] sm:$0x1]
    %v282 = vmul.f32 %v281, %v61
    %v283 = vlaneseq
    %v284 = vshrl.u32 %v283, 7
    %v285 = vsub.s32 0, %v284
    %v286 = vrot.slane %v281, %v285
    %v287 = vadd.f32 %v286, %v48
    %v288 = vadd.f32 %v286, %v49
    %v289 = vlog2.pop %v287
    %v290 = vmul.f32 %v289, 0.6931472
    %v291 = vlog2.pop %v288
    %v292 = vmul.f32 %v291, 0.6931472
    %v293 = vlaneseq
    %v294 = vshrl.u32 %v293, 7
    %v295 = vsub.s32 0, %v294
    %v296 = vrot.slane %v282, %v295
    %v297 = vmul.f32 %v296, %v290
    %v298 = vmul.f32 %v296, %v292
    %v299 = vadd.f32 %v277, %v297
    %v300 = vadd.f32 %v278, %v298
    %v301 = vadd.f32 %v279, %v290
    %v302 = vadd.f32 %v280, %v292
    %v303 = vmul.f32 %v72, %v301
    %v304 = vmul.f32 %v73, %v302
    %v305 = vadd.f32 %v299, %v303
    %v306 = vadd.f32 %v300, %v304
    %v307 = vsub.f32 %v129, %v305
    %v308 = vsub.f32 %v130, %v306
    %309 = vst.msk [vmem:[#allocation2] sm:$0xff] %vm50, %v307
    %310 = vst.msk [vmem:[#allocation2 + $0x8] sm:$0xff] %vm50, %v308
    %v311 = vld [vmem:[#allocation4 + $0x8] sm:$0x1]
    %v312 = vmul.f32 %v311, %v61
    %v313 = vlaneseq
    %v314 = vshrl.u32 %v313, 7
    %v315 = vsub.s32 0, %v314
    %v316 = vrot.slane %v311, %v315
    %v317 = vadd.f32 %v316, %v48
    %v318 = vadd.f32 %v316, %v49
    %v319 = vlog2.pop %v317
    %v320 = vmul.f32 %v319, 0.6931472
    %v321 = vlog2.pop %v318
    %v322 = vmul.f32 %v321, 0.6931472
    %v323 = vlaneseq
    %v324 = vshrl.u32 %v323, 7
    %v325 = vsub.s32 0, %v324
    %v326 = vrot.slane %v312, %v325
    %v327 = vmul.f32 %v326, %v320
    %v328 = vmul.f32 %v326, %v322
    %v329 = vld [vmem:[#allocation4 + $0x9] sm:$0x1]
    %v330 = vmul.f32 %v329, %v61
    %v331 = vlaneseq
    %v332 = vshrl.u32 %v331, 7
    %v333 = vsub.s32 0, %v332
    %v334 = vrot.slane %v329, %v333
    %v335 = vadd.f32 %v334, %v48
    %v336 = vadd.f32 %v334, %v49
    %v337 = vlog2.pop %v335
    %v338 = vmul.f32 %v337, 0.6931472
    %v339 = vlog2.pop %v336
    %v340 = vmul.f32 %v339, 0.6931472
    %v341 = vlaneseq
    %v342 = vshrl.u32 %v341, 7
    %v343 = vsub.s32 0, %v342
    %v344 = vrot.slane %v330, %v343
    %v345 = vmul.f32 %v344, %v338
    %v346 = vmul.f32 %v344, %v340
    %v347 = vadd.f32 %v327, %v345
    %v348 = vadd.f32 %v328, %v346
    %v349 = vadd.f32 %v320, %v338
    %v350 = vadd.f32 %v322, %v340
    %v351 = vld [vmem:[#allocation4 + $0xa] sm:$0x1]
    %v352 = vmul.f32 %v351, %v61
    %v353 = vlaneseq
    %v354 = vshrl.u32 %v353, 7
    %v355 = vsub.s32 0, %v354
    %v356 = vrot.slane %v351, %v355
    %v357 = vadd.f32 %v356, %v48
    %v358 = vadd.f32 %v356, %v49
    %v359 = vlog2.pop %v357
    %v360 = vmul.f32 %v359, 0.6931472
    %v361 = vlog2.pop %v358
    %v362 = vmul.f32 %v361, 0.6931472
    %v363 = vlaneseq
    %v364 = vshrl.u32 %v363, 7
    %v365 = vsub.s32 0, %v364
    %v366 = vrot.slane %v352, %v365
    %v367 = vmul.f32 %v366, %v360
    %v368 = vmul.f32 %v366, %v362
    %v369 = vadd.f32 %v347, %v367
    %v370 = vadd.f32 %v348, %v368
    %v371 = vadd.f32 %v349, %v360
    %v372 = vadd.f32 %v350, %v362
    %v373 = vld [vmem:[#allocation4 + $0xb] sm:$0x1]
    %v374 = vmul.f32 %v373, %v61
    %v375 = vlaneseq
    %v376 = vshrl.u32 %v375, 7
    %v377 = vsub.s32 0, %v376
    %v378 = vrot.slane %v373, %v377
    %v379 = vadd.f32 %v378, %v48
    %v380 = vadd.f32 %v378, %v49
    %v381 = vlog2.pop %v379
    %v382 = vmul.f32 %v381, 0.6931472
    %v383 = vlog2.pop %v380
    %v384 = vmul.f32 %v383, 0.6931472
    %v385 = vlaneseq
    %v386 = vshrl.u32 %v385, 7
    %v387 = vsub.s32 0, %v386
    %v388 = vrot.slane %v374, %v387
    %v389 = vmul.f32 %v388, %v382
    %v390 = vmul.f32 %v388, %v384
    %v391 = vadd.f32 %v369, %v389
    %v392 = vadd.f32 %v370, %v390
    %v393 = vadd.f32 %v371, %v382
    %v394 = vadd.f32 %v372, %v384
    %v395 = vld [vmem:[#allocation4 + $0xc] sm:$0x1]
    %v396 = vmul.f32 %v395, %v61
    %v397 = vlaneseq
    %v398 = vshrl.u32 %v397, 7
    %v399 = vsub.s32 0, %v398
    %v400 = vrot.slane %v395, %v399
    %v401 = vadd.f32 %v400, %v48
    %v402 = vadd.f32 %v400, %v49
    %v403 = vlog2.pop %v401
    %v404 = vmul.f32 %v403, 0.6931472
    %v405 = vlog2.pop %v402
    %v406 = vmul.f32 %v405, 0.6931472
    %v407 = vlaneseq
    %v408 = vshrl.u32 %v407, 7
    %v409 = vsub.s32 0, %v408
    %v410 = vrot.slane %v396, %v409
    %v411 = vmul.f32 %v410, %v404
    %v412 = vmul.f32 %v410, %v406
    %v413 = vadd.f32 %v391, %v411
    %v414 = vadd.f32 %v392, %v412
    %v415 = vadd.f32 %v393, %v404
    %v416 = vadd.f32 %v394, %v406
    %v417 = vld [vmem:[#allocation4 + $0xd] sm:$0x1]
    %v418 = vmul.f32 %v417, %v61
    %v419 = vlaneseq
    %v420 = vshrl.u32 %v419, 7
    %v421 = vsub.s32 0, %v420
    %v422 = vrot.slane %v417, %v421
    %v423 = vadd.f32 %v422, %v48
    %v424 = vadd.f32 %v422, %v49
    %v425 = vlog2.pop %v423
    %v426 = vmul.f32 %v425, 0.6931472
    %v427 = vlog2.pop %v424
    %v428 = vmul.f32 %v427, 0.6931472
    %v429 = vlaneseq
    %v430 = vshrl.u32 %v429, 7
    %v431 = vsub.s32 0, %v430
    %v432 = vrot.slane %v418, %v431
    %v433 = vmul.f32 %v432, %v426
    %v434 = vmul.f32 %v432, %v428
    %v435 = vadd.f32 %v413, %v433
    %v436 = vadd.f32 %v414, %v434
    %v437 = vadd.f32 %v415, %v426
    %v438 = vadd.f32 %v416, %v428
    %v439 = vld [vmem:[#allocation4 + $0xe] sm:$0x1]
    %v440 = vmul.f32 %v439, %v61
    %v441 = vlaneseq
    %v442 = vshrl.u32 %v441, 7
    %v443 = vsub.s32 0, %v442
    %v444 = vrot.slane %v439, %v443
    %v445 = vadd.f32 %v444, %v48
    %v446 = vadd.f32 %v444, %v49
    %v447 = vlog2.pop %v445
    %v448 = vmul.f32 %v447, 0.6931472
    %v449 = vlog2.pop %v446
    %v450 = vmul.f32 %v449, 0.6931472
    %v451 = vlaneseq
    %v452 = vshrl.u32 %v451, 7
    %v453 = vsub.s32 0, %v452
    %v454 = vrot.slane %v440, %v453
    %v455 = vmul.f32 %v454, %v448
    %v456 = vmul.f32 %v454, %v450
    %v457 = vadd.f32 %v435, %v455
    %v458 = vadd.f32 %v436, %v456
    %v459 = vadd.f32 %v437, %v448
    %v460 = vadd.f32 %v438, %v450
    %v461 = vld [vmem:[#allocation4 + $0xf] sm:$0x1]
    %v462 = vmul.f32 %v461, %v61
    %v463 = vlaneseq
    %v464 = vshrl.u32 %v463, 7
    %v465 = vsub.s32 0, %v464
    %v466 = vrot.slane %v461, %v465
    %v467 = vadd.f32 %v466, %v48
    %v468 = vadd.f32 %v466, %v49
    %v469 = vlog2.pop %v467
    %v470 = vmul.f32 %v469, 0.6931472
    %v471 = vlog2.pop %v468
    %v472 = vmul.f32 %v471, 0.6931472
    %v473 = vlaneseq
    %v474 = vshrl.u32 %v473, 7
    %v475 = vsub.s32 0, %v474
    %v476 = vrot.slane %v462, %v475
    %v477 = vmul.f32 %v476, %v470
    %v478 = vmul.f32 %v476, %v472
    %v479 = vadd.f32 %v457, %v477
    %v480 = vadd.f32 %v458, %v478
    %v481 = vadd.f32 %v459, %v470
    %v482 = vadd.f32 %v460, %v472
    %v483 = vmul.f32 %v72, %v481
    %v484 = vmul.f32 %v73, %v482
    %v485 = vadd.f32 %v479, %v483
    %v486 = vadd.f32 %v480, %v484
    %v487 = vld [vmem:[#allocation2] sm:$0xff]
    %v488 = vld [vmem:[#allocation2 + $0x8] sm:$0xff]
    %v489 = vsub.f32 %v487, %v485
    %v490 = vsub.f32 %v488, %v486
    %491 = vst.msk [vmem:[#allocation2] sm:$0xff] %vm50, %v489
    %492 = vst.msk [vmem:[#allocation2 + $0x8] sm:$0xff] %vm50, %v490
    %v493 = vld [vmem:[#allocation2] sm:$0xff]
    %v494 = vld [vmem:[#allocation2 + $0x8] sm:$0xff]
    %v495 = vld [vmem:[#allocation9] sm:$0x1]
    %v496 = vsel %vm50, %v493, 0.0
    %v497 = vsel %vm50, %v494, 0.0
    %v498 = vadd.f32 %v496, %v497
    %499 = vadd.xlane.f32.xlu0 %v498
    %v500 = vpop.xlane.xlu0 %499
    %v501 = vrot.slane %v500, 4
    %v502 = vadd.f32 %v500, %v501
    %v503 = vrot.slane %v502, 2
    %v504 = vadd.f32 %v502, %v503
    %v505 = vrot.slane %v504, 1
    %v506 = vadd.f32 %v504, %v505
    %s507 = vtos %v506
    %s508 = smul.f32 %s507, 0.5
    %v509 = vstv %s508
    %v510 = vadd.f32 %v495, %v509
    %vm511 = vcmask 0
    %512 = vst.msk [vmem:[#allocation9] sm:$0x1] %vm511, %v510
    // Predicated region
    $region22: #{tpu_custom_call.1} parent=1 // pred_check
      _
    $region23: #{tpu_custom_call.1} parent=1 // pred_check_branch
      %514 = sbr.rel (0) target = $region25
    $region24: #{tpu_custom_call.1} parent=1 // pred_region
      %s516 = ssub.s32 16, 16
      %517 = vsyncadd [#allocation6], %s516
      %s519 = sshll.u32 [#allocation9], 4
      %s520 = int_to_ptr.vmem [resolvable:$true] %s519
      %522 = dma.vmem_to_hbm [thread:$0]  %s520, 16, %s2, [#allocation6]
    $region25: #{tpu_custom_call.1} parent=1 // pred_fallthru
      _
    // Predicated region
    $region26: #{tpu_custom_call.1} parent=1 // pred_check
      _
    $region27: #{tpu_custom_call.1} parent=1 // pred_check_branch
      %524 = sbr.rel (0) target = $region29
    $region28: #{tpu_custom_call.1} parent=1 // pred_region
      %525 = dma.done [#allocation6], 16
    $region29: #{tpu_custom_call.1} parent=1 // pred_fallthru
      _
    %526 = vsyncpa [#allocation5], 1
    %527 = vsyncpa [#allocation8], 1
    %528 = vsyncpa [#allocation6], 1

</llo_original>
